<compile_context>
chip_gen: v7x
topology: tpu7x:2x2x1
jax: 0.10.0
libtpu: 0.0.40
codegen_flags: <defaults>
</compile_context>

<pallas_src>
import math

import jax
import jax.numpy as jnp
from jax import lax
from jax.experimental import pallas as pl
from jax.experimental.pallas import tpu as pltpu


def _make_kernel(*, t_k, tk_blk, n_kv, has_bias, has_len):
    """Builds a kernel specialized on static shape / feature flags."""
    multi = n_kv > 1
    padded = (n_kv * tk_blk) != t_k

    def kernel(*refs):
        idx = 0
        q_ref, k_ref, wq_ref, wk_ref, att_ref = refs[idx:idx + 5]
        idx += 5
        bias_ref = None
        len_ref = None
        if has_bias:
            bias_ref = refs[idx]
            idx += 1
        if has_len:
            len_ref = refs[idx]
            idx += 1
        ctx_ref, scores_ref = refs[idx:idx + 2]
        idx += 2
        if multi:
            pq_sc, m_sc, l_sc, acc_sc, s_sc = refs[idx:idx + 5]

        b_blk, tq, qs = q_ref.shape
        _, tk, ks = k_ref.shape
        n = wq_ref.shape[1]
        ik = pl.program_id(2)

        def project_q():
            q2 = q_ref[...].reshape(b_blk * tq, qs)
            return jnp.dot(q2, wq_ref[...],
                           preferred_element_type=jnp.float32
                           ).reshape(b_blk, tq, n)

        if multi:
            @pl.when(ik == 0)
            def _init():
                m_sc[...] = jnp.full_like(m_sc, -1e30)
                l_sc[...] = jnp.zeros_like(l_sc)
                acc_sc[...] = jnp.zeros_like(acc_sc)
                pq_sc[...] = project_q()
            pq = pq_sc[...]
        else:
            pq = project_q()

        # Key projection for this t_k tile (MXU); bias folded in once per tile
        # (O(tk*n)), and dropped entirely when normalize=False.
        keys = k_ref[...]                                     # (b_blk, tk, ks)
        pk = jnp.dot(keys.reshape(b_blk * tk, ks), wk_ref[...],
                     preferred_element_type=jnp.float32)
        if has_bias:
            pk = pk + bias_ref[...]
        pk = pk.reshape(b_blk, 1, tk, n)

        # score = tanh(pq + pk) . att  (tanh on the EUP; reduce over n)
        th = jnp.tanh(pq.reshape(b_blk, tq, 1, n) + pk)       # (b, tq, tk, n)
        s = jnp.sum(th * att_ref[...], axis=-1)               # (b, tq, tk) f32

        need_cols = has_len or padded
        if need_cols:
            col = (lax.broadcasted_iota(jnp.int32, (b_blk, tq, tk), 2)
                   + ik * tk_blk)
        if has_len:
            # mirrors scores.masked_fill_(mask, -65504.0) of the module
            # TODO(synk): only length-style masks (what set_mask builds) are
            # supported; arbitrary precomputed boolean masks are not.
            s = jnp.where(col >= len_ref[...], -65504.0, s)

        if not multi:
            # single t_k tile: plain (torch-identical) softmax
            m = jnp.max(s, axis=-1, keepdims=True)
            p = jnp.exp(s - m)
            inv_l = pl.reciprocal(jnp.sum(p, axis=-1, keepdims=True),
                                  approx=True)
            p = p * inv_l
            ctx = jnp.einsum('bqk,bkd->bqd', p.astype(keys.dtype), keys,
                             preferred_element_type=jnp.float32)
            ctx_ref[...] = ctx.astype(ctx_ref.dtype)
            scores_ref[...] = p.astype(scores_ref.dtype)
        else:
            # stash raw (finite-masked) scores; they stay resident across the
            # t_k axis so the exact normalized score matrix can be emitted at
            # the last step.
            s_sc[ik] = s

            # online-softmax accumulation; dead columns go to -inf so a fully
            # masked / padded tile cannot be resurrected by the per-tile max.
            dead = None
            if has_len:
                dead = col >= len_ref[...]
            if padded:
                pad_dead = col >= t_k
                dead = pad_dead if dead is None else (dead | pad_dead)
            s_acc = s if dead is None else jnp.where(dead, -jnp.inf, s)

            m_prev = m_sc[...]
            m_new = jnp.maximum(m_prev, jnp.max(s_acc, axis=-1, keepdims=True))
            alpha = jnp.exp(m_prev - m_new)
            p = jnp.exp(s_acc - m_new)
            l_sc[...] = alpha * l_sc[...] + jnp.sum(p, axis=-1, keepdims=True)
            acc_sc[...] = alpha * acc_sc[...] + jnp.einsum(
                'bqk,bkd->bqd', p.astype(keys.dtype), keys,
                preferred_element_type=jnp.float32)
            m_sc[...] = m_new

            @pl.when(ik == n_kv - 1)
            def _finalize():
                inv_l = pl.reciprocal(l_sc[...], approx=True)
                ctx_ref[...] = (acc_sc[...] * inv_l).astype(ctx_ref.dtype)
                m = m_sc[...]
                for j in range(n_kv):         # static unroll, epilogue only
                    pj = jnp.exp(s_sc[j] - m) * inv_l
                    scores_ref[:, :, j * tk_blk:(j + 1) * tk_blk] = (
                        pj.astype(scores_ref.dtype))

    return kernel


def _default_tiles(b, t_q, t_k, n):
    """Pick (b_blk, tq_blk, tk_blk) so the f32 tanh intermediate stays small."""
    # batch tile: largest divisor of b keeping the projection row count modest
    b_blk = 1
    for cand in range(b, 0, -1):
        if b % cand == 0 and cand * t_q <= 512:
            b_blk = cand
            break
    # t_q tile: keep full unless it is large and cleanly divisible by 8
    tq_blk = t_q
    if t_q > 128 and t_q % 8 == 0:
        for cand in (128, 64, 32, 16, 8):
            if t_q % cand == 0:
                tq_blk = cand
                break
    # t_k tile: bound the f32 (b_blk, tq_blk, tk_blk, n) intermediate to ~8 MiB
    budget_elems = (8 * 1024 * 1024) // 4
    cap = budget_elems // max(1, b_blk * tq_blk * n)
    cap = max(8, min(512, cap))
    if t_k <= cap:
        tk_blk = t_k
    else:
        tk_blk = (cap // 8) * 8
    return b_blk, tq_blk, tk_blk


def bahdanau_attention(query, keys, wq, wk, linear_att, *,
                       normalize=False, normalize_scalar=None,
                       normalize_bias=None, batch_first=False,
                       context_len=None,
                       b_blk=None, tq_blk=None, tk_blk=None):
    """Matches BahdanauAttention.forward (optionally with set_mask via context_len).

    query: (t_q, b, qs) or (b, qs) if not batch_first; (b, t_q, qs)/(b, qs) otherwise.
    keys : (t_k, b, ks) if not batch_first; (b, t_k, ks) otherwise.
    wq   : (num_units, query_size)   (PyTorch nn.Linear weight layout)
    wk   : (num_units, key_size)
    linear_att : (num_units,)
    context_len: optional (b,) lengths -> mask = idx >= len (set_mask semantics).
    """
    if not batch_first:
        keys = jnp.transpose(keys, (1, 0, 2))
        if query.ndim == 3:
            query = jnp.transpose(query, (1, 0, 2))
    single_query = query.ndim == 2
    if single_query:
        query = query[:, None, :]

    b, t_q, qs = query.shape
    _, t_k, ks = keys.shape
    n = wq.shape[0]
    out_dtype = query.dtype

    # effective attention vector / bias (tiny -> plain JAX glue)
    if normalize:
        if normalize_scalar is None:       # module default: 1/sqrt(num_units)
            normalize_scalar = jnp.asarray(1.0 / math.sqrt(n), linear_att.dtype)
        if normalize_bias is None:         # module default: zeros
            normalize_bias = jnp.zeros((n,), linear_att.dtype)
        att_eff = (linear_att / jnp.linalg.norm(linear_att)
                   * jnp.reshape(normalize_scalar, ()))
        bias_row = jnp.reshape(normalize_bias, (1, n))
    else:
        att_eff = linear_att
        bias_row = None

    has_bias = bias_row is not None
    has_len = context_len is not None

    d_b, d_tq, d_tk = _default_tiles(b, t_q, t_k, n)
    b_blk = d_b if b_blk is None else b_blk
    tq_blk = d_tq if tq_blk is None else tq_blk
    tk_blk = d_tk if tk_blk is None else min(tk_blk, t_k)
    assert b % b_blk == 0 and t_q % tq_blk == 0

    n_kv = pl.cdiv(t_k, tk_blk)
    t_k_pad = n_kv * tk_blk
    if t_k_pad != t_k:
        keys = jnp.pad(keys, ((0, 0), (0, t_k_pad - t_k), (0, 0)))

    # keep caller dtypes (bf16 stays bf16); only the weights are transposed once
    wq_t = jnp.transpose(wq)               # (qs, n)
    wk_t = jnp.transpose(wk)               # (ks, n)
    att_row = jnp.reshape(att_eff, (1, n))

    inputs = [query, keys, wq_t, wk_t, att_row]
    in_specs = [
        pl.BlockSpec((b_blk, tq_blk, qs), lambda ib, iq, ik: (ib, iq, 0)),
        pl.BlockSpec((b_blk, tk_blk, ks), lambda ib, iq, ik: (ib, ik, 0)),
        pl.BlockSpec((qs, n), lambda ib, iq, ik: (0, 0)),
        pl.BlockSpec((ks, n), lambda ib, iq, ik: (0, 0)),
        pl.BlockSpec((1, n), lambda ib, iq, ik: (0, 0)),
    ]
    if has_bias:
        inputs.append(bias_row)
        in_specs.append(pl.BlockSpec((1, n), lambda ib, iq, ik: (0, 0)))
    if has_len:
        lens = jnp.asarray(context_len, jnp.int32).reshape(b, 1, 1)
        inputs.append(lens)
        in_specs.append(
            pl.BlockSpec((b_blk, 1, 1), lambda ib, iq, ik: (ib, 0, 0)))

    out_specs = (
        pl.BlockSpec((b_blk, tq_blk, ks), lambda ib, iq, ik: (ib, iq, 0)),
        pl.BlockSpec((b_blk, tq_blk, t_k_pad), lambda ib, iq, ik: (ib, iq, 0)),
    )
    out_shape = (
        jax.ShapeDtypeStruct((b, t_q, ks), out_dtype),
        jax.ShapeDtypeStruct((b, t_q, t_k_pad), out_dtype),
    )

    scratch_shapes = []
    if n_kv > 1:
        scratch_shapes = [
            pltpu.VMEM((b_blk, tq_blk, n), jnp.float32),             # pq
            pltpu.VMEM((b_blk, tq_blk, 1), jnp.float32),             # m
            pltpu.VMEM((b_blk, tq_blk, 1), jnp.float32),             # l
            pltpu.VMEM((b_blk, tq_blk, ks), jnp.float32),            # ctx acc
            pltpu.VMEM((n_kv, b_blk, tq_blk, tk_blk), jnp.float32),  # raw scores
        ]

    kernel = _make_kernel(t_k=t_k, tk_blk=tk_blk, n_kv=n_kv,
                          has_bias=has_bias, has_len=has_len)

    ctx, scores = pl.pallas_call(
        kernel,
        grid=(b // b_blk, t_q // tq_blk, n_kv),
        in_specs=in_specs,
        out_specs=out_specs,
        out_shape=out_shape,
        scratch_shapes=scratch_shapes,
        compiler_params=pltpu.CompilerParams(
            dimension_semantics=("parallel", "parallel", "arbitrary"),
            vmem_limit_bytes=64 * 1024 * 1024),
    )(*inputs)

    if t_k_pad != t_k:
        scores = scores[:, :, :t_k]

    if single_query:
        ctx = ctx[:, 0, :]
        scores = scores[:, 0, :]
    elif not batch_first:
        ctx = jnp.transpose(ctx, (1, 0, 2))
        scores = jnp.transpose(scores, (1, 0, 2))
    return ctx, scores


def _reference(query, keys, wq, wk, linear_att, *, normalize=False,
               normalize_scalar=None, normalize_bias=None,
               batch_first=False, context_len=None):
    """Pure-JAX re-implementation of BahdanauAttention.forward."""
    if not batch_first:
        keys = jnp.transpose(keys, (1, 0, 2))
        if query.ndim == 3:
            query = jnp.transpose(query, (1, 0, 2))
    single_query = query.ndim == 2
    if single_query:
        query = query[:, None, :]
    _, t_k, _ = keys.shape
    n = wq.shape[0]

    pq = query @ wq.T
    pk = keys @ wk.T
    sum_qk = pq[:, :, None, :] + pk[:, None, :, :]
    if normalize:
        if normalize_scalar is None:
            normalize_scalar = 1.0 / math.sqrt(n)
        if normalize_bias is None:
            normalize_bias = jnp.zeros((n,), linear_att.dtype)
        sum_qk = sum_qk + normalize_bias
        att = (linear_att / jnp.linalg.norm(linear_att)
               * jnp.reshape(jnp.asarray(normalize_scalar), ()))
    else:
        att = linear_att
    scores = jnp.tanh(sum_qk) @ att
    if context_len is not None:
        idx = jnp.arange(t_k)[None, None, :]
        mask = idx >= jnp.asarray(context_len)[:, None, None]
        scores = jnp.where(mask, -65504.0, scores)
    p = jax.nn.softmax(scores, axis=-1)
    ctx = jnp.einsum('bqk,bkd->bqd', p, keys)
    if single_query:
        return ctx[:, 0], p[:, 0]
    if not batch_first:
        return jnp.transpose(ctx, (1, 0, 2)), jnp.transpose(p, (1, 0, 2))
    return ctx, p


if __name__ == "__main__":
    init_weight = 0.1

    # --- test 1: GNMT-style time-major inputs, no mask, default tiling ------
    b, t_q, t_k = 2, 4, 8
    qs = ks = n = 32
    k1, k2, k3, k4, k5 = jax.random.split(jax.random.PRNGKey(0), 5)
    wq = jax.random.uniform(k1, (n, qs), jnp.float32, -init_weight, init_weight)
    wk = jax.random.uniform(k2, (n, ks), jnp.float32, -init_weight, init_weight)
    att = jax.random.uniform(k3, (n,), jnp.float32, -init_weight, init_weight)
    query = jax.random.normal(k4, (t_q, b, qs), jnp.float32)
    keys = jax.random.normal(k5, (t_k, b, ks), jnp.float32)

    ctx, sc = bahdanau_attention(query, keys, wq, wk, att, batch_first=False)
    jax.block_until_ready((ctx, sc))
    ctx_r, sc_r = _reference(query, keys, wq, wk, att, batch_first=False)
    assert ctx.shape == (t_q, b, ks) and sc.shape == (t_q, b, t_k)
    assert jnp.allclose(ctx, ctx_r, atol=2e-3, rtol=2e-3)
    assert jnp.allclose(sc, sc_r, atol=2e-3, rtol=2e-3)

    # --- test 2: batch-first, normalize + length mask, forced t_q/t_k tiling -
    b2, t_q2, t_k2 = 2, 16, 40
    qs2, ks2, n2 = 32, 48, 64
    k6, k7, k8, k9, k10, k11 = jax.random.split(jax.random.PRNGKey(1), 6)
    wq2 = jax.random.uniform(k6, (n2, qs2), jnp.float32, -init_weight, init_weight)
    wk2 = jax.random.uniform(k7, (n2, ks2), jnp.float32, -init_weight, init_weight)
    att2 = jax.random.uniform(k8, (n2,), jnp.float32, -init_weight, init_weight)
    nbias2 = jax.random.uniform(k9, (n2,), jnp.float32, -init_weight, init_weight)
    q2 = jax.random.normal(k10, (b2, t_q2, qs2), jnp.float32)
    kk2 = jax.random.normal(k11, (b2, t_k2, ks2), jnp.float32)
    clen = jnp.array([40, 17], jnp.int32)

    ctx2, sc2 = bahdanau_attention(
        q2, kk2, wq2, wk2, att2, normalize=True,
        normalize_scalar=jnp.asarray(1.0 / math.sqrt(n2), jnp.float32),
        normalize_bias=nbias2, batch_first=True, context_len=clen,
        b_blk=1, tq_blk=8, tk_blk=16)
    jax.block_until_ready((ctx2, sc2))
    ctx2_r, sc2_r = _reference(
        q2, kk2, wq2, wk2, att2, normalize=True,
        normalize_scalar=1.0 / math.sqrt(n2), normalize_bias=nbias2,
        batch_first=True, context_len=clen)
    assert ctx2.shape == (b2, t_q2, ks2) and sc2.shape == (b2, t_q2, t_k2)
    assert jnp.allclose(ctx2, ctx2_r, atol=2e-3, rtol=2e-3)
    assert jnp.allclose(sc2, sc2_r, atol=2e-3, rtol=2e-3)

    print("KERNEL_OK")
</pallas_src>

<mosaic_0001>
module attributes {stable_mosaic.version = 11 : i64} {
  func.func @kernel(%arg0: i32, %arg1: i32, %arg2: i32, %arg3: memref<2x4x32xf32, #tpu.memory_space<vmem>>, %arg4: memref<2x8x32xf32, #tpu.memory_space<vmem>>, %arg5: memref<32x32xf32, #tpu.memory_space<vmem>>, %arg6: memref<32x32xf32, #tpu.memory_space<vmem>>, %arg7: memref<1x32xf32, #tpu.memory_space<vmem>>, %arg8: memref<2x4x32xf32, #tpu.memory_space<vmem>>, %arg9: memref<2x4x8xf32, #tpu.memory_space<vmem>>) attributes {dimension_semantics = [#tpu.dimension_semantics<parallel>, #tpu.dimension_semantics<parallel>, #tpu.dimension_semantics<arbitrary>], iteration_bounds = array<i64: 1, 1, 1>, scalar_prefetch = 0 : i64, scratch_operands = 0 : i64, tpu.core_type = #tpu.core_type<tc>, window_params = [{transform_indices = @transform_0, window_bounds = array<i64: 2, 4, 32>}, {transform_indices = @transform_1, window_bounds = array<i64: 2, 8, 32>}, {pipeline_mode = #tpu.pipeline_mode<synchronous>, transform_indices = @transform_2, window_bounds = array<i64: 32, 32>}, {pipeline_mode = #tpu.pipeline_mode<synchronous>, transform_indices = @transform_3, window_bounds = array<i64: 32, 32>}, {pipeline_mode = #tpu.pipeline_mode<synchronous>, transform_indices = @transform_4, window_bounds = array<i64: 1, 32>}, {transform_indices = @transform_5, window_bounds = array<i64: 2, 4, 32>}, {transform_indices = @transform_6, window_bounds = array<i64: 2, 4, 8>}]} {
    %c0 = arith.constant 0 : index
    %c0_0 = arith.constant 0 : index
    %c0_1 = arith.constant 0 : index
    %0 = vector.load %arg3[%c0, %c0_0, %c0_1] : memref<2x4x32xf32, #tpu.memory_space<vmem>>, vector<2x4x32xf32>
    %1 = vector.shape_cast %0 : vector<2x4x32xf32> to vector<8x32xf32>
    %c0_2 = arith.constant 0 : index
    %c0_3 = arith.constant 0 : index
    %2 = vector.load %arg5[%c0_2, %c0_3] : memref<32x32xf32, #tpu.memory_space<vmem>>, vector<32x32xf32>
    %cst = arith.constant dense<0.000000e+00> : vector<8x32xf32>
    %3 = tpu.matmul %1, %2, %cst {dimension_numbers = #tpu.dot_dimension_numbers<[1], [0], [0], [1], [0, 0, 1, 1], [], []>} : vector<8x32xf32>, vector<32x32xf32>, vector<8x32xf32> -> vector<8x32xf32>
    %4 = vector.shape_cast %3 : vector<8x32xf32> to vector<2x4x32xf32>
    %c0_4 = arith.constant 0 : index
    %c0_5 = arith.constant 0 : index
    %c0_6 = arith.constant 0 : index
    %5 = vector.load %arg4[%c0_4, %c0_5, %c0_6] : memref<2x8x32xf32, #tpu.memory_space<vmem>>, vector<2x8x32xf32>
    %6 = vector.shape_cast %5 : vector<2x8x32xf32> to vector<16x32xf32>
    %c0_7 = arith.constant 0 : index
    %c0_8 = arith.constant 0 : index
    %7 = vector.load %arg6[%c0_7, %c0_8] : memref<32x32xf32, #tpu.memory_space<vmem>>, vector<32x32xf32>
    %cst_9 = arith.constant dense<0.000000e+00> : vector<16x32xf32>
    %8 = tpu.matmul %6, %7, %cst_9 {dimension_numbers = #tpu.dot_dimension_numbers<[1], [0], [0], [1], [0, 0, 1, 1], [], []>} : vector<16x32xf32>, vector<32x32xf32>, vector<16x32xf32> -> vector<16x32xf32>
    %9 = vector.shape_cast %8 : vector<16x32xf32> to vector<2x1x8x32xf32>
    %10 = vector.shape_cast %4 : vector<2x4x32xf32> to vector<2x4x1x32xf32>
    %11 = vector.broadcast %10 : vector<2x4x1x32xf32> to vector<2x4x8x32xf32>
    %12 = vector.broadcast %9 : vector<2x1x8x32xf32> to vector<2x4x8x32xf32>
    %13 = arith.addf %11, %12 : vector<2x4x8x32xf32>
    %14 = math.tanh %13 : vector<2x4x8x32xf32>
    %c0_10 = arith.constant 0 : index
    %c0_11 = arith.constant 0 : index
    %15 = vector.load %arg7[%c0_10, %c0_11] : memref<1x32xf32, #tpu.memory_space<vmem>>, vector<1x32xf32>
    %16 = vector.shape_cast %15 : vector<1x32xf32> to vector<1x1x1x32xf32>
    %17 = vector.broadcast %16 : vector<1x1x1x32xf32> to vector<2x4x8x32xf32>
    %18 = arith.mulf %14, %17 : vector<2x4x8x32xf32>
    %cst_12 = arith.constant dense<0.000000e+00> : vector<2x4x8xf32>
    %19 = vector.multi_reduction <add>, %18, %cst_12 [3] : vector<2x4x8x32xf32> to vector<2x4x8xf32>
    %cst_13 = arith.constant dense<0xFF800000> : vector<2x4xf32>
    %20 = vector.multi_reduction <maximumf>, %19, %cst_13 [2] : vector<2x4x8xf32> to vector<2x4xf32>
    %21 = vector.shape_cast %20 : vector<2x4xf32> to vector<2x4x1xf32>
    %22 = vector.broadcast %21 : vector<2x4x1xf32> to vector<2x4x8xf32>
    %23 = arith.subf %19, %22 : vector<2x4x8xf32>
    %24 = math.exp %23 : vector<2x4x8xf32>
    %cst_14 = arith.constant dense<0.000000e+00> : vector<2x4xf32>
    %25 = vector.multi_reduction <add>, %24, %cst_14 [2] : vector<2x4x8xf32> to vector<2x4xf32>
    %26 = vector.shape_cast %25 : vector<2x4xf32> to vector<2x4x1xf32>
    %27 = tpu.reciprocal %26 {approx = true} : vector<2x4x1xf32> -> vector<2x4x1xf32>
    %28 = vector.broadcast %27 : vector<2x4x1xf32> to vector<2x4x8xf32>
    %29 = arith.mulf %24, %28 : vector<2x4x8xf32>
    "tpu.trace_start"() <{level = 10 : i32, message = "bqk,bkd->bqd"}> : () -> ()
    %cst_15 = arith.constant dense<0.000000e+00> : vector<2x4x32xf32>
    %30 = tpu.matmul %29, %5, %cst_15 {dimension_numbers = #tpu.dot_dimension_numbers<[2], [1], [1], [2], [0, 0, 0, 1, 1, 2], [0], [0]>} : vector<2x4x8xf32>, vector<2x8x32xf32>, vector<2x4x32xf32> -> vector<2x4x32xf32>
    "tpu.trace_stop"() : () -> ()
    %c0_16 = arith.constant 0 : index
    %c0_17 = arith.constant 0 : index
    %c0_18 = arith.constant 0 : index
    %31 = vector.load %arg8[%c0_16, %c0_17, %c0_18] : memref<2x4x32xf32, #tpu.memory_space<vmem>>, vector<2x4x32xf32>
    tpu.vector_store %arg8[%c0_16, %c0_17, %c0_18], %30 {strides = array<i32>} : memref<2x4x32xf32, #tpu.memory_space<vmem>>, vector<2x4x32xf32>,
    %c0_19 = arith.constant 0 : index
    %c0_20 = arith.constant 0 : index
    %c0_21 = arith.constant 0 : index
    %32 = vector.load %arg9[%c0_19, %c0_20, %c0_21] : memref<2x4x8xf32, #tpu.memory_space<vmem>>, vector<2x4x8xf32>
    tpu.vector_store %arg9[%c0_19, %c0_20, %c0_21], %29 {strides = array<i32>} : memref<2x4x8xf32, #tpu.memory_space<vmem>>, vector<2x4x8xf32>,
    return
  }
  func.func @transform_0(%arg0: i32, %arg1: i32, %arg2: i32) -> (i32, i32, i32) {
    %c0_i32 = arith.constant 0 : i32
    %c0_i32_0 = arith.constant 0 : i32
    return %arg0, %arg1, %c0_i32 : i32, i32, i32
  }
  func.func @transform_1(%arg0: i32, %arg1: i32, %arg2: i32) -> (i32, i32, i32) {
    %c0_i32 = arith.constant 0 : i32
    %c0_i32_0 = arith.constant 0 : i32
    return %arg0, %arg2, %c0_i32 : i32, i32, i32
  }
  func.func @transform_2(%arg0: i32, %arg1: i32, %arg2: i32) -> (i32, i32) {
    %c0_i32 = arith.constant 0 : i32
    %c0_i32_0 = arith.constant 0 : i32
    %c0_i32_1 = arith.constant 0 : i32
    return %c0_i32, %c0_i32_0 : i32, i32
  }
  func.func @transform_3(%arg0: i32, %arg1: i32, %arg2: i32) -> (i32, i32) {
    %c0_i32 = arith.constant 0 : i32
    %c0_i32_0 = arith.constant 0 : i32
    %c0_i32_1 = arith.constant 0 : i32
    return %c0_i32, %c0_i32_0 : i32, i32
  }
  func.func @transform_4(%arg0: i32, %arg1: i32, %arg2: i32) -> (i32, i32) {
    %c0_i32 = arith.constant 0 : i32
    %c0_i32_0 = arith.constant 0 : i32
    %c0_i32_1 = arith.constant 0 : i32
    return %c0_i32, %c0_i32_0 : i32, i32
  }
  func.func @transform_5(%arg0: i32, %arg1: i32, %arg2: i32) -> (i32, i32, i32) {
    %c0_i32 = arith.constant 0 : i32
    %c0_i32_0 = arith.constant 0 : i32
    return %arg0, %arg1, %c0_i32 : i32, i32, i32
  }
  func.func @transform_6(%arg0: i32, %arg1: i32, %arg2: i32) -> (i32, i32, i32) {
    %c0_i32 = arith.constant 0 : i32
    %c0_i32_0 = arith.constant 0 : i32
    return %arg0, %arg1, %c0_i32 : i32, i32, i32
  }
}

</mosaic_0001>

<llo_original>
// kernel: tpu_custom_call.1
$region0: #{tpu_custom_call.1}
  #allocation0 [shape = 'u32[]', space=smem, size = 0x4, offset = 0x4, fixed_abs, tag = 'smem constant byte address 0x4 - core index']
  #allocation1 [shape = 'u32[144,128]{1,0:T(1,128)}', space=vmem, size = 0x12000, scoped, tag = 'internal scratch']
  %s0 = inlined_call_operand.hbm [shape: f32[2,4,32], index: 0, kind: input, shape index: {}]
  %s1 = inlined_call_operand.hbm [shape: f32[2,8,32], index: 1, kind: input, shape index: {}]
  %s2 = inlined_call_operand.hbm [shape: f32[32,32], index: 2, kind: input, shape index: {}]
  %s3 = inlined_call_operand.hbm [shape: f32[32,32], index: 3, kind: input, shape index: {}]
  %s4 = inlined_call_operand.hbm [shape: f32[1,32], index: 4, kind: input, shape index: {}]
  %s5 = inlined_call_operand.hbm [shape: f32[2,4,32], index: 5, kind: output, shape index: {0}]
  %s6 = inlined_call_operand.hbm [shape: f32[2,4,8], index: 6, kind: output, shape index: {1}]
  %7 = xla_tuple %s5, %s6
  %s8 = sld [smem:[#allocation0]]
  $region58: #{tpu_custom_call.1} parent=0
    _
  %s10 = ssub.s32 1, %s8
  %s11 = scalar_select 0, %s10, %s8
  $region1: #{tpu_custom_call.1} parent=0
    #allocation2 [shape = 'u8[4096]{0}', space=vmem, size = 0x1000, scoped, tag = 'input window, operand 0, single buffered']
    #allocation3 [shape = 's32[1]{0}', space=sflag, size = 0x4, scoped, tag = 'scoped memory for tpu_custom_call.1']
    #allocation4 [shape = 's32[1]{0}', space=sflag, size = 0x4, scoped, tag = 'scoped memory for tpu_custom_call.1']
    #allocation5 [shape = 'u8[8192]{0}', space=vmem, size = 0x2000, scoped, tag = 'input window, operand 1, single buffered']
    #allocation6 [shape = 's32[1]{0}', space=sflag, size = 0x4, scoped, tag = 'scoped memory for tpu_custom_call.1']
    #allocation7 [shape = 'u8[16384]{0}', space=vmem, size = 0x4000, scoped, tag = 'input window, operand 2, single buffered']
    #allocation8 [shape = 'u8[16384]{0}', space=vmem, size = 0x4000, scoped, tag = 'input window, operand 3, single buffered']
    #allocation9 [shape = 's32[1]{0}', space=sflag, size = 0x4, scoped, tag = 'scoped memory for tpu_custom_call.1']
    #allocation10 [shape = 'u8[512]{0}', space=vmem, size = 0x400, scoped, tag = 'input window, operand 4, single buffered']
    #allocation11 [shape = 'u8[4096]{0}', space=vmem, size = 0x1000, scoped, tag = 'output window, operand 0, single buffered']
    #allocation12 [shape = 'u8[4096]{0}', space=vmem, size = 0x1000, scoped, tag = 'output window, operand 1, single buffered']
    #allocation13 [shape = 's32[1]{0}', space=sflag, size = 0x4, scoped, tag = 'scoped memory for tpu_custom_call.1']
    %12 = vsyncpa [#allocation3], 0
    %13 = vsyncpa [#allocation6], 0
    %14 = vsyncpa [#allocation9], 0
    %15 = vsyncpa [#allocation4], 0
    %16 = vsyncpa [#allocation13], 0
    // Predicated region
    $region2: #{tpu_custom_call.1} parent=1 // pred_check
      _
    $region3: #{tpu_custom_call.1} parent=1 // pred_check_branch
      %18 = sbr.rel (0) target = $region5
    $region4: #{tpu_custom_call.1} parent=1 // pred_region
      %s20 = ssub.s32 128, 128
      %21 = vsyncadd [#allocation3], %s20
      %s22 = sshll.u32 [#allocation2], 4
      %s23 = int_to_ptr.vmem [resolvable:$true] %s22
      %28 = dma.hbm_to_vmem [thread:$0]  %s0, 128, %s23, [#allocation3], 64, 64, 4
    $region5: #{tpu_custom_call.1} parent=1 // pred_fallthru
      _
    // Predicated region
    $region6: #{tpu_custom_call.1} parent=1 // pred_check
      _
    $region7: #{tpu_custom_call.1} parent=1 // pred_check_branch
      %30 = sbr.rel (0) target = $region9
    $region8: #{tpu_custom_call.1} parent=1 // pred_region
      %s32 = ssub.s32 256, 256
      %33 = vsyncadd [#allocation6], %s32
      %s34 = sshll.u32 [#allocation5], 4
      %s35 = int_to_ptr.vmem [resolvable:$true] %s34
      %40 = dma.hbm_to_vmem [thread:$0]  %s1, 256, %s35, [#allocation6], 128, 128, 8
    $region9: #{tpu_custom_call.1} parent=1 // pred_fallthru
      _
    // Predicated region
    $region10: #{tpu_custom_call.1} parent=1 // pred_check
      _
    $region11: #{tpu_custom_call.1} parent=1 // pred_check_branch
      %42 = sbr.rel (0) target = $region13
    $region12: #{tpu_custom_call.1} parent=1 // pred_region
      %s44 = ssub.s32 512, 512
      %45 = vsyncadd [#allocation6], %s44
      %s46 = sshll.u32 [#allocation7], 4
      %s47 = int_to_ptr.vmem [resolvable:$true] %s46
      %52 = dma.hbm_to_vmem [thread:$0]  %s2, 512, %s47, [#allocation6], 128, 128, 8
    $region13: #{tpu_custom_call.1} parent=1 // pred_fallthru
      _
    // Predicated region
    $region14: #{tpu_custom_call.1} parent=1 // pred_check
      _
    $region15: #{tpu_custom_call.1} parent=1 // pred_check_branch
      %54 = sbr.rel (0) target = $region17
    $region16: #{tpu_custom_call.1} parent=1 // pred_region
      %s56 = ssub.s32 512, 512
      %57 = vsyncadd [#allocation9], %s56
      %s58 = sshll.u32 [#allocation8], 4
      %s59 = int_to_ptr.vmem [resolvable:$true] %s58
      %64 = dma.hbm_to_vmem [thread:$0]  %s3, 512, %s59, [#allocation9], 128, 128, 8
    $region17: #{tpu_custom_call.1} parent=1 // pred_fallthru
      _
    // Predicated region
    $region18: #{tpu_custom_call.1} parent=1 // pred_check
      _
    $region19: #{tpu_custom_call.1} parent=1 // pred_check_branch
      %66 = sbr.rel (0) target = $region21
    $region20: #{tpu_custom_call.1} parent=1 // pred_region
      %s68 = ssub.s32 16, 16
      %69 = vsyncadd [#allocation9], %s68
      %s71 = sshll.u32 [#allocation10], 4
      %s72 = int_to_ptr.vmem [resolvable:$true] %s71
      %74 = dma.hbm_to_vmem [thread:$0]  %s4, 16, %s72, [#allocation9]
    $region21: #{tpu_custom_call.1} parent=1 // pred_fallthru
      _
    // Predicated region
    $region22: #{tpu_custom_call.1} parent=1 // pred_check
      _
    $region23: #{tpu_custom_call.1} parent=1 // pred_check_branch
      %76 = sbr.rel (0) target = $region25
    $region24: #{tpu_custom_call.1} parent=1 // pred_region
      %77 = dma.done [#allocation3], 128
    $region25: #{tpu_custom_call.1} parent=1 // pred_fallthru
      _
    // Predicated region
    $region26: #{tpu_custom_call.1} parent=1 // pred_check
      _
    $region27: #{tpu_custom_call.1} parent=1 // pred_check_branch
      %79 = sbr.rel (0) target = $region29
    $region28: #{tpu_custom_call.1} parent=1 // pred_region
      %80 = dma.done [#allocation6], 256
    $region29: #{tpu_custom_call.1} parent=1 // pred_fallthru
      _
    // Predicated region
    $region30: #{tpu_custom_call.1} parent=1 // pred_check
      _
    $region31: #{tpu_custom_call.1} parent=1 // pred_check_branch
      %82 = sbr.rel (0) target = $region33
    $region32: #{tpu_custom_call.1} parent=1 // pred_region
      %83 = dma.done [#allocation6], 512
    $region33: #{tpu_custom_call.1} parent=1 // pred_fallthru
      _
    // Predicated region
    $region34: #{tpu_custom_call.1} parent=1 // pred_check
      _
    $region35: #{tpu_custom_call.1} parent=1 // pred_check_branch
      %85 = sbr.rel (0) target = $region37
    $region36: #{tpu_custom_call.1} parent=1 // pred_region
      %86 = dma.done [#allocation9], 512
    $region37: #{tpu_custom_call.1} parent=1 // pred_fallthru
      _
    // Predicated region
    $region38: #{tpu_custom_call.1} parent=1 // pred_check
      _
    $region39: #{tpu_custom_call.1} parent=1 // pred_check_branch
      %88 = sbr.rel (0) target = $region41
    $region40: #{tpu_custom_call.1} parent=1 // pred_region
      %89 = dma.done [#allocation9], 16
    $region41: #{tpu_custom_call.1} parent=1 // pred_fallthru
      _
    %v90 = vld [vmem:[#allocation2] sm:$0xf]
    %v91 = vld [vmem:[#allocation2 + $0x4] sm:$0xf]
    %v92 = vld [vmem:[#allocation7] sm:$0xff]
    %v93 = vld [vmem:[#allocation7 + $0x8] sm:$0xff]
    %v94 = vld [vmem:[#allocation7 + $0x10] sm:$0xff]
    %v95 = vld [vmem:[#allocation7 + $0x18] sm:$0xff]
    %v98 = vcombine.low %v90, %v91
    %vm99 = vcmask 261120
    %v100 = vsel %vm99, %v98, 0
    %102 = vmatprep.subr.mxu0 0.0
    %103 = vmatpush1.msra.mxu0 %v92
    %104 = vmatprep.subr.mxu0 0.0
    %105 = vmatpush1.msra.mxu0 %v93
    %106 = vmatprep.subr.mxu0 0.0
    %107 = vmatpush1.msra.mxu0 %v94
    %108 = vmatprep.subr.mxu0 0.0
    %109 = vmatpush1.msra.mxu0 %v95
    %110 = vmatprep.subr.mxu0 0.0
    %111 = vmatpush1.msra.mxu0 0.0
    %112 = vmatprep.subr.mxu0 0.0
    %113 = vmatpush1.msra.mxu0 0.0
    %114 = vmatprep.subr.mxu0 0.0
    %115 = vmatpush1.msra.mxu0 0.0
    %116 = vmatprep.subr.mxu0 0.0
    %117 = vmatpush1.msra.mxu0 0.0
    %118 = vmatprep.subr.mxu0 0.0
    %119 = vmatpush1.msra.mxu0 0.0
    %120 = vmatprep.subr.mxu0 0.0
    %121 = vmatpush1.msra.mxu0 0.0
    %122 = vmatprep.subr.mxu0 0.0
    %123 = vmatpush1.msra.mxu0 0.0
    %124 = vmatprep.subr.mxu0 0.0
    %125 = vmatpush1.msra.mxu0 0.0
    %126 = vmatprep.subr.mxu0 0.0
    %127 = vmatpush1.msra.mxu0 0.0
    %128 = vmatprep.subr.mxu0 0.0
    %129 = vmatpush1.msra.mxu0 0.0
    %130 = vmatprep.subr.mxu0 0.0
    %131 = vmatpush1.msra.mxu0 0.0
    %132 = vmatprep.subr.mxu0 0.0
    %133 = vmatpush1.msra.mxu0 0.0
    %134 = vmatprep.subr.mxu0 0.0
    %135 = vmatpush1.msra.mxu0 0.0
    %136 = vmatprep.subr.mxu0 0.0
    %137 = vmatpush1.msra.mxu0 0.0
    %138 = vmatprep.subr.mxu0 0.0
    %139 = vmatpush1.msra.mxu0 0.0
    %140 = vmatprep.subr.mxu0 0.0
    %141 = vmatpush1.msra.mxu0 0.0
    %142 = vmatprep.subr.mxu0 0.0
    %143 = vmatpush1.msra.mxu0 0.0
    %144 = vmatprep.subr.mxu0 0.0
    %145 = vmatpush1.msra.mxu0 0.0
    %146 = vmatprep.subr.mxu0 0.0
    %147 = vmatpush1.msra.mxu0 0.0
    %148 = vmatprep.subr.mxu0 0.0
    %149 = vmatpush1.msra.mxu0 0.0
    %150 = vmatprep.subr.mxu0 0.0
    %151 = vmatpush1.msra.mxu0 0.0
    %152 = vmatprep.subr.mxu0 0.0
    %153 = vmatpush1.msra.mxu0 0.0
    %154 = vmatprep.subr.mxu0 0.0
    %155 = vmatpush1.msra.mxu0 0.0
    %156 = vmatprep.subr.mxu0 0.0
    %157 = vmatpush1.msra.mxu0 0.0
    %158 = vmatprep.subr.mxu0 0.0
    %159 = vmatpush1.msra.mxu0 0.0
    %160 = vmatprep.subr.mxu0 0.0
    %161 = vmatpush1.msra.mxu0 0.0
    %162 = vmatprep.subr.mxu0 0.0
    %163 = vmatpush1.msra.mxu0 0.0
    %164 = vmatprep.subr.mxu0 0.0
    %165 = vmatpush1.msra.mxu0 0.0
    %166 = vmatprep.mubr.f32.mxu0 0.0
    %167 = vmatmul.mubr.f32.gmra.mrb[0].mxu0 %v100
    %v168 = vpop.f32.mrb[0].mxu0
    %v169 = vadd.f32 0.0, %v168
    %v170 = vpop.f32.mrb[0].mxu0
    %171 = vdwg.mxu0
    %v172 = vld [vmem:[#allocation5] sm:$0xff]
    %v173 = vld [vmem:[#allocation5 + $0x8] sm:$0xff]
    %v174 = vld [vmem:[#allocation8] sm:$0xff]
    %v175 = vld [vmem:[#allocation8 + $0x8] sm:$0xff]
    %v176 = vld [vmem:[#allocation8 + $0x10] sm:$0xff]
    %v177 = vld [vmem:[#allocation8 + $0x18] sm:$0xff]
    %v179 = vsel %vm99, %v172, 0
    %v182 = vsel %vm99, %v173, 0
    %184 = vmatprep.subr.mxu0 0.0
    %185 = vmatpush1.msra.mxu0 %v174
    %186 = vmatprep.subr.mxu0 0.0
    %187 = vmatpush1.msra.mxu0 %v175
    %188 = vmatprep.subr.mxu0 0.0
    %189 = vmatpush1.msra.mxu0 %v176
    %190 = vmatprep.subr.mxu0 0.0
    %191 = vmatpush1.msra.mxu0 %v177
    %192 = vmatprep.subr.mxu0 0.0
    %193 = vmatpush1.msra.mxu0 0.0
    %194 = vmatprep.subr.mxu0 0.0
    %195 = vmatpush1.msra.mxu0 0.0
    %196 = vmatprep.subr.mxu0 0.0
    %197 = vmatpush1.msra.mxu0 0.0
    %198 = vmatprep.subr.mxu0 0.0
    %199 = vmatpush1.msra.mxu0 0.0
    %200 = vmatprep.subr.mxu0 0.0
    %201 = vmatpush1.msra.mxu0 0.0
    %202 = vmatprep.subr.mxu0 0.0
    %203 = vmatpush1.msra.mxu0 0.0
    %204 = vmatprep.subr.mxu0 0.0
    %205 = vmatpush1.msra.mxu0 0.0
    %206 = vmatprep.subr.mxu0 0.0
    %207 = vmatpush1.msra.mxu0 0.0
    %208 = vmatprep.subr.mxu0 0.0
    %209 = vmatpush1.msra.mxu0 0.0
    %210 = vmatprep.subr.mxu0 0.0
    %211 = vmatpush1.msra.mxu0 0.0
    %212 = vmatprep.subr.mxu0 0.0
    %213 = vmatpush1.msra.mxu0 0.0
    %214 = vmatprep.subr.mxu0 0.0
    %215 = vmatpush1.msra.mxu0 0.0
    %216 = vmatprep.subr.mxu0 0.0
    %217 = vmatpush1.msra.mxu0 0.0
    %218 = vmatprep.subr.mxu0 0.0
    %219 = vmatpush1.msra.mxu0 0.0
    %220 = vmatprep.subr.mxu0 0.0
    %221 = vmatpush1.msra.mxu0 0.0
    %222 = vmatprep.subr.mxu0 0.0
    %223 = vmatpush1.msra.mxu0 0.0
    %224 = vmatprep.subr.mxu0 0.0
    %225 = vmatpush1.msra.mxu0 0.0
    %226 = vmatprep.subr.mxu0 0.0
    %227 = vmatpush1.msra.mxu0 0.0
    %228 = vmatprep.subr.mxu0 0.0
    %229 = vmatpush1.msra.mxu0 0.0
    %230 = vmatprep.subr.mxu0 0.0
    %231 = vmatpush1.msra.mxu0 0.0
    %232 = vmatprep.subr.mxu0 0.0
    %233 = vmatpush1.msra.mxu0 0.0
    %234 = vmatprep.subr.mxu0 0.0
    %235 = vmatpush1.msra.mxu0 0.0
    %236 = vmatprep.subr.mxu0 0.0
    %237 = vmatpush1.msra.mxu0 0.0
    %238 = vmatprep.subr.mxu0 0.0
    %239 = vmatpush1.msra.mxu0 0.0
    %240 = vmatprep.subr.mxu0 0.0
    %241 = vmatpush1.msra.mxu0 0.0
    %242 = vmatprep.subr.mxu0 0.0
    %243 = vmatpush1.msra.mxu0 0.0
    %244 = vmatprep.subr.mxu0 0.0
    %245 = vmatpush1.msra.mxu0 0.0
    %246 = vmatprep.subr.mxu0 0.0
    %247 = vmatpush1.msra.mxu0 0.0
    %248 = vmatprep.mubr.f32.mxu0 0.0
    %249 = vmatmul.mubr.f32.gmra.mrb[0].mxu0 %v179
    %v250 = vpop.f32.mrb[0].mxu0
    %v251 = vadd.f32 0.0, %v250
    %v252 = vpop.f32.mrb[0].mxu0
    %253 = vmatprep.mubr.f32.mxu0 0.0
    %254 = vmatmul.mubr.f32.gmra.mrb[0].mxu0 %v182
    %v255 = vpop.f32.mrb[0].mxu0
    %v256 = vadd.f32 0.0, %v255
    %v257 = vpop.f32.mrb[0].mxu0
    %258 = vdwg.mxu0
    %v260 = vcombine.high %v169, %v169
    %v262 = vunpack.c.l.s4 1966171168
    %v263 = vunpack.c.0.s8 %v262
    %v264 = vlaneseq
    %v265 = vshrl.u32 %v264, 7
    %v266 = vsub.s32 %v263, %v265
    %v267 = vrot.slane %v169, %v266
    %v269 = vunpack.c.l.s4 1966171168
    %v270 = vunpack.c.0.s8 %v269
    %v271 = vlaneseq
    %v272 = vshrl.u32 %v271, 7
    %v273 = vsub.s32 %v270, %v272
    %v274 = vrot.slane %v260, %v273
    %v275 = vcombine.high %v267, %v267
    %v276 = vcombine.high %v274, %v274
    %v278 = vunpack.c.l.s4 1966171168
    %v279 = vunpack.c.0.s8 %v278
    %v280 = vlaneseq
    %v281 = vshrl.u32 %v280, 7
    %v282 = vsub.s32 %v279, %v281
    %v283 = vrot.slane %v267, %v282
    %v285 = vunpack.c.l.s4 1966171168
    %v286 = vunpack.c.0.s8 %v285
    %v287 = vlaneseq
    %v288 = vshrl.u32 %v287, 7
    %v289 = vsub.s32 %v286, %v288
    %v290 = vrot.slane %v274, %v289
    %v292 = vunpack.c.l.s4 1966171168
    %v293 = vunpack.c.0.s8 %v292
    %v294 = vlaneseq
    %v295 = vshrl.u32 %v294, 7
    %v296 = vsub.s32 %v293, %v295
    %v297 = vrot.slane %v275, %v296
    %v299 = vunpack.c.l.s4 1966171168
    %v300 = vunpack.c.0.s8 %v299
    %v301 = vlaneseq
    %v302 = vshrl.u32 %v301, 7
    %v303 = vsub.s32 %v300, %v302
    %v304 = vrot.slane %v276, %v303
    %v305 = vcombine.high %v283, %v283
    %v306 = vcombine.high %v290, %v290
    %v307 = vcombine.high %v297, %v297
    %v308 = vcombine.high %v304, %v304
    %v309 = vlaneseq
    %v310 = vshrl.u32 %v309, 7
    %v311 = vsub.s32 0, %v310
    %v312 = vrot.slane %v283, %v311
    %v313 = vlaneseq
    %v314 = vshrl.u32 %v313, 7
    %v315 = vsub.s32 0, %v314
    %v316 = vrot.slane %v297, %v315
    %v317 = vlaneseq
    %v318 = vshrl.u32 %v317, 7
    %v319 = vsub.s32 0, %v318
    %v320 = vrot.slane %v305, %v319
    %v321 = vlaneseq
    %v322 = vshrl.u32 %v321, 7
    %v323 = vsub.s32 0, %v322
    %v324 = vrot.slane %v307, %v323
    %v325 = vlaneseq
    %v326 = vshrl.u32 %v325, 7
    %v327 = vsub.s32 0, %v326
    %v328 = vrot.slane %v290, %v327
    %v329 = vlaneseq
    %v330 = vshrl.u32 %v329, 7
    %v331 = vsub.s32 0, %v330
    %v332 = vrot.slane %v304, %v331
    %v333 = vlaneseq
    %v334 = vshrl.u32 %v333, 7
    %v335 = vsub.s32 0, %v334
    %v336 = vrot.slane %v306, %v335
    %v337 = vlaneseq
    %v338 = vshrl.u32 %v337, 7
    %v339 = vsub.s32 0, %v338
    %v340 = vrot.slane %v308, %v339
    %v349 = vadd.f32 %v312, %v251
    %v350 = vadd.f32 %v316, %v251
    %v351 = vadd.f32 %v320, %v251
    %v352 = vadd.f32 %v324, %v251
    %v353 = vadd.f32 %v328, %v256
    %v354 = vadd.f32 %v332, %v256
    %v355 = vadd.f32 %v336, %v256
    %v356 = vadd.f32 %v340, %v256
    %v357 = vtanh.pop %v349
    %v358 = vtanh.pop %v350
    %v359 = vtanh.pop %v351
    %v360 = vtanh.pop %v352
    %v361 = vtanh.pop %v353
    %v362 = vtanh.pop %v354
    %v363 = vtanh.pop %v355
    %v364 = vtanh.pop %v356
    %v365 = vld [vmem:[#allocation10] sm:$0x1]
    %v367 = vlaneseq
    %v368 = vshrl.u32 %v367, 7
    %v369 = vsub.s32 0, %v368
    %v370 = vrot.slane %v365, %v369
    %v372 = vmul.f32 %v357, %v370
    %v373 = vmul.f32 %v358, %v370
    %v374 = vmul.f32 %v359, %v370
    %v375 = vmul.f32 %v360, %v370
    %v376 = vmul.f32 %v361, %v370
    %v377 = vmul.f32 %v362, %v370
    %v378 = vmul.f32 %v363, %v370
    %v379 = vmul.f32 %v364, %v370
    %v380 = vsel %vm99, %v372, 0.0
    %381 = vadd.xlane.f32.xlu0 %v380
    %v382 = vpop.xlane.xlu0 %381
    %v383 = vsel %vm99, %v373, 0.0
    %384 = vadd.xlane.f32.xlu0 %v383
    %v385 = vpop.xlane.xlu0 %384
    %v386 = vsel %vm99, %v374, 0.0
    %387 = vadd.xlane.f32.xlu0 %v386
    %v388 = vpop.xlane.xlu0 %387
    %v389 = vsel %vm99, %v375, 0.0
    %390 = vadd.xlane.f32.xlu0 %v389
    %v391 = vpop.xlane.xlu0 %390
    %v392 = vsel %vm99, %v376, 0.0
    %393 = vadd.xlane.f32.xlu0 %v392
    %v394 = vpop.xlane.xlu0 %393
    %v395 = vsel %vm99, %v377, 0.0
    %396 = vadd.xlane.f32.xlu0 %v395
    %v397 = vpop.xlane.xlu0 %396
    %v398 = vsel %vm99, %v378, 0.0
    %399 = vadd.xlane.f32.xlu0 %v398
    %v400 = vpop.xlane.xlu0 %399
    %v401 = vsel %vm99, %v379, 0.0
    %402 = vadd.xlane.f32.xlu0 %v401
    %v403 = vpop.xlane.xlu0 %402
    %v412 = vlaneseq
    %v413 = vand.u32 %v412, 127
    %v414 = vlaneseq
    %v415 = vshrl.u32 %v414, 7
    %v416 = vsub.s32 %v413, %v415
    %v417 = vrot.slane %v382, %v416
    %v418 = vlaneseq
    %v419 = vshrl.u32 %v418, 7
    %v420 = vsub.s32 %v413, %v419
    %v421 = vrot.slane %v385, %v420
    %v422 = vlaneseq
    %v423 = vshrl.u32 %v422, 7
    %v424 = vsub.s32 %v413, %v423
    %v425 = vrot.slane %v388, %v424
    %v426 = vlaneseq
    %v427 = vshrl.u32 %v426, 7
    %v428 = vsub.s32 %v413, %v427
    %v429 = vrot.slane %v391, %v428
    %v430 = vlaneseq
    %v431 = vshrl.u32 %v430, 7
    %v432 = vsub.s32 %v413, %v431
    %v433 = vrot.slane %v394, %v432
    %v434 = vlaneseq
    %v435 = vshrl.u32 %v434, 7
    %v436 = vsub.s32 %v413, %v435
    %v437 = vrot.slane %v397, %v436
    %v438 = vlaneseq
    %v439 = vshrl.u32 %v438, 7
    %v440 = vsub.s32 %v413, %v439
    %v441 = vrot.slane %v400, %v440
    %v442 = vlaneseq
    %v443 = vshrl.u32 %v442, 7
    %v444 = vsub.s32 %v413, %v443
    %v445 = vrot.slane %v403, %v444
    %vm446 = vcmask 1041409
    %v447 = vsel %vm446, %v421, %v417
    %vm448 = vcmask 1042434
    %v449 = vsel %vm448, %v425, %v447
    %vm450 = vcmask 1043459
    %v451 = vsel %vm450, %v429, %v449
    %v452 = vsel %vm446, %v437, %v433
    %v453 = vsel %vm448, %v441, %v452
    %v454 = vsel %vm450, %v445, %v453
    %vm457 = vcmask 60416
    %v458 = vsel %vm457, %v451, -inf
    %459 = vmax.xlane.f32.xlu0 %v458
    %v460 = vpop.xlane.xlu0 %459
    %v461 = vsel %vm457, %v454, -inf
    %462 = vmax.xlane.f32.xlu0 %v461
    %v463 = vpop.xlane.xlu0 %462
    %v466 = vlaneseq
    %v467 = vshrl.u32 %v466, 7
    %v468 = vsub.s32 0, %v467
    %v469 = vrot.slane %v460, %v468
    %v470 = vlaneseq
    %v471 = vshrl.u32 %v470, 7
    %v472 = vsub.s32 1, %v471
    %v473 = vrot.slane %v460, %v472
    %v474 = vlaneseq
    %v475 = vshrl.u32 %v474, 7
    %v476 = vsub.s32 2, %v475
    %v477 = vrot.slane %v460, %v476
    %v478 = vlaneseq
    %v479 = vshrl.u32 %v478, 7
    %v480 = vsub.s32 3, %v479
    %v481 = vrot.slane %v460, %v480
    %v482 = vlaneseq
    %v483 = vshrl.u32 %v482, 7
    %v484 = vsub.s32 0, %v483
    %v485 = vrot.slane %v463, %v484
    %v486 = vlaneseq
    %v487 = vshrl.u32 %v486, 7
    %v488 = vsub.s32 1, %v487
    %v489 = vrot.slane %v463, %v488
    %v490 = vlaneseq
    %v491 = vshrl.u32 %v490, 7
    %v492 = vsub.s32 2, %v491
    %v493 = vrot.slane %v463, %v492
    %v494 = vlaneseq
    %v495 = vshrl.u32 %v494, 7
    %v496 = vsub.s32 3, %v495
    %v497 = vrot.slane %v463, %v496
    %v506 = vsub.f32 %v382, %v469
    %v507 = vsub.f32 %v385, %v473
    %v508 = vsub.f32 %v388, %v477
    %v509 = vsub.f32 %v391, %v481
    %v510 = vsub.f32 %v394, %v485
    %v511 = vsub.f32 %v397, %v489
    %v512 = vsub.f32 %v400, %v493
    %v513 = vsub.f32 %v403, %v497
    %v514 = vmul.f32 %v506, 1.442695
    %v515 = vpow.pop %v514
    %v516 = vmul.f32 %v507, 1.442695
    %v517 = vpow.pop %v516
    %v518 = vmul.f32 %v508, 1.442695
    %v519 = vpow.pop %v518
    %v520 = vmul.f32 %v509, 1.442695
    %v521 = vpow.pop %v520
    %v522 = vmul.f32 %v510, 1.442695
    %v523 = vpow.pop %v522
    %v524 = vmul.f32 %v511, 1.442695
    %v525 = vpow.pop %v524
    %v526 = vmul.f32 %v512, 1.442695
    %v527 = vpow.pop %v526
    %v528 = vmul.f32 %v513, 1.442695
    %v529 = vpow.pop %v528
    %538 = vset.pattern.permute.xlu0 0
    %539 = vperm.xlu0 %538, %v515
    %v540 = vpop.permute.xlu0 %539
    %541 = vset.pattern.permute.xlu0 0
    %542 = vperm.xlu0 %541, %v517
    %v543 = vpop.permute.xlu0 %542
    %544 = vset.pattern.permute.xlu0 0
    %545 = vperm.xlu0 %544, %v519
    %v546 = vpop.permute.xlu0 %545
    %547 = vset.pattern.permute.xlu0 0
    %548 = vperm.xlu0 %547, %v521
    %v549 = vpop.permute.xlu0 %548
    %550 = vset.pattern.permute.xlu0 0
    %551 = vperm.xlu0 %550, %v523
    %v552 = vpop.permute.xlu0 %551
    %553 = vset.pattern.permute.xlu0 0
    %554 = vperm.xlu0 %553, %v525
    %v555 = vpop.permute.xlu0 %554
    %556 = vset.pattern.permute.xlu0 0
    %557 = vperm.xlu0 %556, %v527
    %v558 = vpop.permute.xlu0 %557
    %559 = vset.pattern.permute.xlu0 0
    %560 = vperm.xlu0 %559, %v529
    %v561 = vpop.permute.xlu0 %560
    %v562 = vlaneseq
    %v563 = vshrl.u32 %v562, 7
    %v564 = vsub.s32 %v413, %v563
    %v565 = vrot.slane %v540, %v564
    %v566 = vlaneseq
    %v567 = vshrl.u32 %v566, 7
    %v568 = vsub.s32 %v413, %v567
    %v569 = vrot.slane %v543, %v568
    %v570 = vlaneseq
    %v571 = vshrl.u32 %v570, 7
    %v572 = vsub.s32 %v413, %v571
    %v573 = vrot.slane %v546, %v572
    %v574 = vlaneseq
    %v575 = vshrl.u32 %v574, 7
    %v576 = vsub.s32 %v413, %v575
    %v577 = vrot.slane %v549, %v576
    %v578 = vlaneseq
    %v579 = vshrl.u32 %v578, 7
    %v580 = vsub.s32 %v413, %v579
    %v581 = vrot.slane %v552, %v580
    %v582 = vlaneseq
    %v583 = vshrl.u32 %v582, 7
    %v584 = vsub.s32 %v413, %v583
    %v585 = vrot.slane %v555, %v584
    %v586 = vlaneseq
    %v587 = vshrl.u32 %v586, 7
    %v588 = vsub.s32 %v413, %v587
    %v589 = vrot.slane %v558, %v588
    %v590 = vlaneseq
    %v591 = vshrl.u32 %v590, 7
    %v592 = vsub.s32 %v413, %v591
    %v593 = vrot.slane %v561, %v592
    %v594 = vsel %vm446, %v569, %v565
    %v595 = vsel %vm448, %v573, %v594
    %v596 = vsel %vm450, %v577, %v595
    %v597 = vsel %vm446, %v585, %v581
    %v598 = vsel %vm448, %v589, %v597
    %v599 = vsel %vm450, %v593, %v598
    %v602 = vsel %vm457, %v596, 0.0
    %603 = vadd.xlane.f32.xlu0 %v602
    %v604 = vpop.xlane.xlu0 %603
    %v605 = vsel %vm457, %v599, 0.0
    %606 = vadd.xlane.f32.xlu0 %v605
    %v607 = vpop.xlane.xlu0 %606
    %v608 = vrcp.pop %v604
    %v609 = vrcp.pop %v607
    %v612 = vlaneseq
    %v613 = vshrl.u32 %v612, 7
    %v614 = vsub.s32 0, %v613
    %v615 = vrot.slane %v608, %v614
    %v616 = vlaneseq
    %v617 = vshrl.u32 %v616, 7
    %v618 = vsub.s32 1, %v617
    %v619 = vrot.slane %v608, %v618
    %v620 = vlaneseq
    %v621 = vshrl.u32 %v620, 7
    %v622 = vsub.s32 2, %v621
    %v623 = vrot.slane %v608, %v622
    %v624 = vlaneseq
    %v625 = vshrl.u32 %v624, 7
    %v626 = vsub.s32 3, %v625
    %v627 = vrot.slane %v608, %v626
    %v628 = vlaneseq
    %v629 = vshrl.u32 %v628, 7
    %v630 = vsub.s32 0, %v629
    %v631 = vrot.slane %v609, %v630
    %v632 = vlaneseq
    %v633 = vshrl.u32 %v632, 7
    %v634 = vsub.s32 1, %v633
    %v635 = vrot.slane %v609, %v634
    %v636 = vlaneseq
    %v637 = vshrl.u32 %v636, 7
    %v638 = vsub.s32 2, %v637
    %v639 = vrot.slane %v609, %v638
    %v640 = vlaneseq
    %v641 = vshrl.u32 %v640, 7
    %v642 = vsub.s32 3, %v641
    %v643 = vrot.slane %v609, %v642
    %v652 = vmul.f32 %v515, %v615
    %v653 = vmul.f32 %v517, %v619
    %v654 = vmul.f32 %v519, %v623
    %v655 = vmul.f32 %v521, %v627
    %v656 = vmul.f32 %v523, %v631
    %v657 = vmul.f32 %v525, %v635
    %v658 = vmul.f32 %v527, %v639
    %v659 = vmul.f32 %v529, %v643
    %664 = vset.pattern.permute.xlu0 0
    %665 = vperm.xlu0 %664, %v652
    %v666 = vpop.permute.xlu0 %665
    %667 = vset.pattern.permute.xlu0 0
    %668 = vperm.xlu0 %667, %v653
    %v669 = vpop.permute.xlu0 %668
    %670 = vset.pattern.permute.xlu0 0
    %671 = vperm.xlu0 %670, %v654
    %v672 = vpop.permute.xlu0 %671
    %673 = vset.pattern.permute.xlu0 0
    %674 = vperm.xlu0 %673, %v655
    %v675 = vpop.permute.xlu0 %674
    %v676 = vlaneseq
    %v677 = vshrl.u32 %v676, 7
    %v678 = vsub.s32 %v413, %v677
    %v679 = vrot.slane %v666, %v678
    %v680 = vlaneseq
    %v681 = vshrl.u32 %v680, 7
    %v682 = vsub.s32 %v413, %v681
    %v683 = vrot.slane %v669, %v682
    %v684 = vlaneseq
    %v685 = vshrl.u32 %v684, 7
    %v686 = vsub.s32 %v413, %v685
    %v687 = vrot.slane %v672, %v686
    %v688 = vlaneseq
    %v689 = vshrl.u32 %v688, 7
    %v690 = vsub.s32 %v413, %v689
    %v691 = vrot.slane %v675, %v690
    %v692 = vsel %vm446, %v683, %v679
    %v693 = vsel %vm448, %v687, %v692
    %v694 = vsel %vm450, %v691, %v693
    %vm695 = vcmask 64512
    %v696 = vsel %vm695, %v694, 0
    %698 = vmatprep.subr.mxu0 0.0
    %699 = vmatpush1.msra.mxu0 %v172
    %700 = vmatprep.subr.mxu0 0.0
    %701 = vmatpush1.msra.mxu0 0.0
    %702 = vmatprep.subr.mxu0 0.0
    %703 = vmatpush1.msra.mxu0 0.0
    %704 = vmatprep.subr.mxu0 0.0
    %705 = vmatpush1.msra.mxu0 0.0
    %706 = vmatprep.subr.mxu0 0.0
    %707 = vmatpush1.msra.mxu0 0.0
    %708 = vmatprep.subr.mxu0 0.0
    %709 = vmatpush1.msra.mxu0 0.0
    %710 = vmatprep.subr.mxu0 0.0
    %711 = vmatpush1.msra.mxu0 0.0
    %712 = vmatprep.subr.mxu0 0.0
    %713 = vmatpush1.msra.mxu0 0.0
    %714 = vmatprep.subr.mxu0 0.0
    %715 = vmatpush1.msra.mxu0 0.0
    %716 = vmatprep.subr.mxu0 0.0
    %717 = vmatpush1.msra.mxu0 0.0
    %718 = vmatprep.subr.mxu0 0.0
    %719 = vmatpush1.msra.mxu0 0.0
    %720 = vmatprep.subr.mxu0 0.0
    %721 = vmatpush1.msra.mxu0 0.0
    %722 = vmatprep.subr.mxu0 0.0
    %723 = vmatpush1.msra.mxu0 0.0
    %724 = vmatprep.subr.mxu0 0.0
    %725 = vmatpush1.msra.mxu0 0.0
    %726 = vmatprep.subr.mxu0 0.0
    %727 = vmatpush1.msra.mxu0 0.0
    %728 = vmatprep.subr.mxu0 0.0
    %729 = vmatpush1.msra.mxu0 0.0
    %730 = vmatprep.subr.mxu0 0.0
    %731 = vmatpush1.msra.mxu0 0.0
    %732 = vmatprep.subr.mxu0 0.0
    %733 = vmatpush1.msra.mxu0 0.0
    %734 = vmatprep.subr.mxu0 0.0
    %735 = vmatpush1.msra.mxu0 0.0
    %736 = vmatprep.subr.mxu0 0.0
    %737 = vmatpush1.msra.mxu0 0.0
    %738 = vmatprep.subr.mxu0 0.0
    %739 = vmatpush1.msra.mxu0 0.0
    %740 = vmatprep.subr.mxu0 0.0
    %741 = vmatpush1.msra.mxu0 0.0
    %742 = vmatprep.subr.mxu0 0.0
    %743 = vmatpush1.msra.mxu0 0.0
    %744 = vmatprep.subr.mxu0 0.0
    %745 = vmatpush1.msra.mxu0 0.0
    %746 = vmatprep.subr.mxu0 0.0
    %747 = vmatpush1.msra.mxu0 0.0
    %748 = vmatprep.subr.mxu0 0.0
    %749 = vmatpush1.msra.mxu0 0.0
    %750 = vmatprep.subr.mxu0 0.0
    %751 = vmatpush1.msra.mxu0 0.0
    %752 = vmatprep.subr.mxu0 0.0
    %753 = vmatpush1.msra.mxu0 0.0
    %754 = vmatprep.subr.mxu0 0.0
    %755 = vmatpush1.msra.mxu0 0.0
    %756 = vmatprep.subr.mxu0 0.0
    %757 = vmatpush1.msra.mxu0 0.0
    %758 = vmatprep.subr.mxu0 0.0
    %759 = vmatpush1.msra.mxu0 0.0
    %760 = vmatprep.subr.mxu0 0.0
    %761 = vmatpush1.msra.mxu0 0.0
    %762 = vmatprep.mubr.f32.mxu0 0.0
    %763 = vmatmul.mubr.f32.gmra.mrb[0].mxu0 %v696
    %v764 = vpop.f32.mrb[0].mxu0
    %v765 = vadd.f32 0.0, %v764
    %v766 = vpop.f32.mrb[0].mxu0
    %767 = vdwg.mxu0
    %772 = vset.pattern.permute.xlu0 0
    %773 = vperm.xlu0 %772, %v656
    %v774 = vpop.permute.xlu0 %773
    %775 = vset.pattern.permute.xlu0 0
    %776 = vperm.xlu0 %775, %v657
    %v777 = vpop.permute.xlu0 %776
    %778 = vset.pattern.permute.xlu0 0
    %779 = vperm.xlu0 %778, %v658
    %v780 = vpop.permute.xlu0 %779
    %781 = vset.pattern.permute.xlu0 0
    %782 = vperm.xlu0 %781, %v659
    %v783 = vpop.permute.xlu0 %782
    %v784 = vlaneseq
    %v785 = vshrl.u32 %v784, 7
    %v786 = vsub.s32 %v413, %v785
    %v787 = vrot.slane %v774, %v786
    %v788 = vlaneseq
    %v789 = vshrl.u32 %v788, 7
    %v790 = vsub.s32 %v413, %v789
    %v791 = vrot.slane %v777, %v790
    %v792 = vlaneseq
    %v793 = vshrl.u32 %v792, 7
    %v794 = vsub.s32 %v413, %v793
    %v795 = vrot.slane %v780, %v794
    %v796 = vlaneseq
    %v797 = vshrl.u32 %v796, 7
    %v798 = vsub.s32 %v413, %v797
    %v799 = vrot.slane %v783, %v798
    %v800 = vsel %vm446, %v791, %v787
    %v801 = vsel %vm448, %v795, %v800
    %v802 = vsel %vm450, %v799, %v801
    %v803 = vsel %vm695, %v802, 0
    %805 = vmatprep.subr.mxu0 0.0
    %806 = vmatpush1.msra.mxu0 %v173
    %807 = vmatprep.subr.mxu0 0.0
    %808 = vmatpush1.msra.mxu0 0.0
    %809 = vmatprep.subr.mxu0 0.0
    %810 = vmatpush1.msra.mxu0 0.0
    %811 = vmatprep.subr.mxu0 0.0
    %812 = vmatpush1.msra.mxu0 0.0
    %813 = vmatprep.subr.mxu0 0.0
    %814 = vmatpush1.msra.mxu0 0.0
    %815 = vmatprep.subr.mxu0 0.0
    %816 = vmatpush1.msra.mxu0 0.0
    %817 = vmatprep.subr.mxu0 0.0
    %818 = vmatpush1.msra.mxu0 0.0
    %819 = vmatprep.subr.mxu0 0.0
    %820 = vmatpush1.msra.mxu0 0.0
    %821 = vmatprep.subr.mxu0 0.0
    %822 = vmatpush1.msra.mxu0 0.0
    %823 = vmatprep.subr.mxu0 0.0
    %824 = vmatpush1.msra.mxu0 0.0
    %825 = vmatprep.subr.mxu0 0.0
    %826 = vmatpush1.msra.mxu0 0.0
    %827 = vmatprep.subr.mxu0 0.0
    %828 = vmatpush1.msra.mxu0 0.0
    %829 = vmatprep.subr.mxu0 0.0
    %830 = vmatpush1.msra.mxu0 0.0
    %831 = vmatprep.subr.mxu0 0.0
    %832 = vmatpush1.msra.mxu0 0.0
    %833 = vmatprep.subr.mxu0 0.0
    %834 = vmatpush1.msra.mxu0 0.0
    %835 = vmatprep.subr.mxu0 0.0
    %836 = vmatpush1.msra.mxu0 0.0
    %837 = vmatprep.subr.mxu0 0.0
    %838 = vmatpush1.msra.mxu0 0.0
    %839 = vmatprep.subr.mxu0 0.0
    %840 = vmatpush1.msra.mxu0 0.0
    %841 = vmatprep.subr.mxu0 0.0
    %842 = vmatpush1.msra.mxu0 0.0
    %843 = vmatprep.subr.mxu0 0.0
    %844 = vmatpush1.msra.mxu0 0.0
    %845 = vmatprep.subr.mxu0 0.0
    %846 = vmatpush1.msra.mxu0 0.0
    %847 = vmatprep.subr.mxu0 0.0
    %848 = vmatpush1.msra.mxu0 0.0
    %849 = vmatprep.subr.mxu0 0.0
    %850 = vmatpush1.msra.mxu0 0.0
    %851 = vmatprep.subr.mxu0 0.0
    %852 = vmatpush1.msra.mxu0 0.0
    %853 = vmatprep.subr.mxu0 0.0
    %854 = vmatpush1.msra.mxu0 0.0
    %855 = vmatprep.subr.mxu0 0.0
    %856 = vmatpush1.msra.mxu0 0.0
    %857 = vmatprep.subr.mxu0 0.0
    %858 = vmatpush1.msra.mxu0 0.0
    %859 = vmatprep.subr.mxu0 0.0
    %860 = vmatpush1.msra.mxu0 0.0
    %861 = vmatprep.subr.mxu0 0.0
    %862 = vmatpush1.msra.mxu0 0.0
    %863 = vmatprep.subr.mxu0 0.0
    %864 = vmatpush1.msra.mxu0 0.0
    %865 = vmatprep.subr.mxu0 0.0
    %866 = vmatpush1.msra.mxu0 0.0
    %867 = vmatprep.subr.mxu0 0.0
    %868 = vmatpush1.msra.mxu0 0.0
    %869 = vmatprep.mubr.f32.mxu0 0.0
    %870 = vmatmul.mubr.f32.gmra.mrb[0].mxu0 %v803
    %v871 = vpop.f32.mrb[0].mxu0
    %v872 = vadd.f32 0.0, %v871
    %v873 = vpop.f32.mrb[0].mxu0
    %874 = vdwg.mxu0
    %vm875 = vcmask 257024
    %876 = vst.msk [vmem:[#allocation11] sm:$0xf] %vm875, %v765
    %877 = vst.msk [vmem:[#allocation11 + $0x4] sm:$0xf] %vm875, %v872
    %880 = vst.msk [vmem:[#allocation12] sm:$0xf] %vm457, %v694
    %881 = vst.msk [vmem:[#allocation12 + $0x4] sm:$0xf] %vm457, %v802
    // Predicated region
    $region42: #{tpu_custom_call.1} parent=1 // pred_check
      _
    $region43: #{tpu_custom_call.1} parent=1 // pred_check_branch
      %883 = sbr.rel (0) target = $region45
    $region44: #{tpu_custom_call.1} parent=1 // pred_region
      %s885 = ssub.s32 128, 128
      %886 = vsyncadd [#allocation4], %s885
      %s887 = sshll.u32 [#allocation11], 4
      %s888 = int_to_ptr.vmem [resolvable:$true] %s887
      %893 = dma.vmem_to_hbm [thread:$0]  %s888, 128, %s5, [#allocation4], 64, 64, 4
    $region45: #{tpu_custom_call.1} parent=1 // pred_fallthru
      _
    // Predicated region
    $region46: #{tpu_custom_call.1} parent=1 // pred_check
      _
    $region47: #{tpu_custom_call.1} parent=1 // pred_check_branch
      %895 = sbr.rel (0) target = $region49
    $region48: #{tpu_custom_call.1} parent=1 // pred_region
      %s897 = ssub.s32 128, 128
      %898 = vsyncadd [#allocation13], %s897
      %s899 = sshll.u32 [#allocation12], 4
      %s900 = int_to_ptr.vmem [resolvable:$true] %s899
      %905 = dma.vmem_to_hbm [thread:$0]  %s900, 128, %s6, [#allocation13], 64, 64, 4
    $region49: #{tpu_custom_call.1} parent=1 // pred_fallthru
      _
    // Predicated region
    $region50: #{tpu_custom_call.1} parent=1 // pred_check
      _
    $region51: #{tpu_custom_call.1} parent=1 // pred_check_branch
      %907 = sbr.rel (0) target = $region53
    $region52: #{tpu_custom_call.1} parent=1 // pred_region
      %908 = dma.done [#allocation4], 128
    $region53: #{tpu_custom_call.1} parent=1 // pred_fallthru
      _
    // Predicated region
    $region54: #{tpu_custom_call.1} parent=1 // pred_check
      _
    $region55: #{tpu_custom_call.1} parent=1 // pred_check_branch
      %910 = sbr.rel (0) target = $region57
    $region56: #{tpu_custom_call.1} parent=1 // pred_region
      %911 = dma.done [#allocation13], 128
    $region57: #{tpu_custom_call.1} parent=1 // pred_fallthru
      _
    %912 = vsyncpa [#allocation3], 1
    %913 = vsyncpa [#allocation6], 1
    %914 = vsyncpa [#allocation9], 1
    %915 = vsyncpa [#allocation4], 1
    %916 = vsyncpa [#allocation13], 1

</llo_original>
